<compile_context>
chip_gen: v7x
topology: tpu7x:2x2x1
jax: 0.10.0
libtpu: 0.0.40
codegen_flags: <defaults>
</compile_context>

<pallas_src>
import functools

import jax
import jax.numpy as jnp
from jax.experimental import pallas as pl
from jax.experimental.pallas import tpu as pltpu

EPS = 1e-7
_LANE = 128


def _round_up(x, m):
    return (x + m - 1) // m * m


def _listmle_kernel(tri_ref, preds_ref, out_ref):
    """tri_ref:   (Np, Np) bf16, tri[k, j] = 1 iff k >= j; constant index_map ->
                  fetched once from HBM and VMEM-resident across grid steps.
       preds_ref: (TILE_B, Np) f32 student preds sorted by teacher order; masked
                  and padded slots hold -inf.
       out_ref:   (1, 1, 1) f32 per-tile partial sum (batch grid axis is "parallel")."""
    p = preds_ref[...]
    neg_inf = jnp.float32(-jnp.inf)
    mask = p == neg_inf                                   # masked / padded slots

    row_max = jnp.max(p, axis=1, keepdims=True)           # max(dim=1, keepdim=True)
    # Guard fully-masked rows (incl. batch padding): avoid (-inf) - (-inf) = NaN.
    row_max = jnp.where(row_max == neg_inf, jnp.float32(0.0), row_max)
    d = p - row_max                                       # -inf at masked slots
    e = jnp.exp(d)                                        # 0.0 at masked slots

    # Reverse cumulative sum along lanes: cumsums[i, j] = sum_{k >= j} e[i, k],
    # as an MXU matmul against the resident triangular matrix.  HIGHEST precision
    # keeps parity with the f32 jnp.cumsum reference; the bf16->f32 cast is exact
    # because tri only holds {0, 1}.
    tri = tri_ref[...].astype(jnp.float32)
    cumsums = jnp.dot(e, tri, preferred_element_type=jnp.float32,
                      precision=jax.lax.Precision.HIGHEST)

    obs = jnp.log(cumsums + EPS) - d                      # observation_loss
    obs = jnp.where(mask, jnp.float32(0.0), obs)          # observation_loss[mask] = 0
    # (Masked slots hold +inf before the select; the select discards them.  Keep the
    #  select — an arithmetic 0*obs mask would turn them into NaN.)

    # Per-tile partial sum: lane reduce then sublane reduce.  No cross-step
    # accumulation -> the grid axis carries no serial dependency ("parallel").
    row = jnp.sum(obs, axis=1, keepdims=True)              # (TILE_B, 1)
    out_ref[...] = jnp.sum(row, axis=0, keepdims=True).reshape(1, 1, 1)


def _listmle_partials(tri, preds, tile_b):
    Bp, Np = preds.shape
    n_tiles = Bp // tile_b
    # Residency estimate: double-buffered preds tile + tri buffers (bf16) + slack.
    vmem_needed = 2 * tile_b * Np * 4 + 2 * Np * Np * 2 + (1 << 20)
    vmem_limit = min(max(vmem_needed, 32 << 20), 64 << 20)   # raise v5e's 16 MiB default,
    #                                                          never exceed v7x physical.
    return pl.pallas_call(
        _listmle_kernel,
        out_shape=jax.ShapeDtypeStruct((n_tiles, 1, 1), jnp.float32),
        grid=(n_tiles,),
        in_specs=[
            # TODO(synk): pipeline_mode=pl.Buffered(1) (constant index_map needs no
            # double buffer) or in-kernel iota generation would shrink tri further
            # for very large N.
            pl.BlockSpec((Np, Np), lambda i: (0, 0)),       # tri: bf16, VMEM-resident
            pl.BlockSpec((tile_b, Np), lambda i: (i, 0)),   # preds: batch tiles
        ],
        out_specs=pl.BlockSpec((1, 1, 1), lambda i: (i, 0, 0)),  # per-tile partial
        compiler_params=pltpu.CompilerParams(
            # Independent per-tile outputs -> shard the batch axis across both
            # TensorCores on v7x megacore; harmless on v5e/v6e (single TC).
            dimension_semantics=("parallel",),
            vmem_limit_bytes=vmem_limit,
        ),
        cost_estimate=pl.CostEstimate(
            flops=2 * Bp * Np * Np,            # reverse-cumsum matmul
            transcendentals=2 * Bp * Np,       # one exp + one log per element
            bytes_accessed=Bp * Np * 4 + Np * Np * 2 + n_tiles * 4,
        ),
    )(tri, preds)


@functools.partial(jax.jit, static_argnames=("gamma_", "tile_b"))
def listmle_loss(teacher_top1_sim_pred, student_top1_sim_pred, perm,
                 gamma_=1.0, tile_b=512):
    """JAX/Pallas equivalent of ListMLE.forward.

    teacher_top1_sim_pred, student_top1_sim_pred: (B, N) float32
    perm: (N,) int32 deterministic replacement for torch.randperm
    """
    y_pred = student_top1_sim_pred.astype(jnp.float32)
    y_true = teacher_top1_sim_pred.astype(jnp.float32)
    B, N = y_pred.shape

    # --- glue (no clean Pallas equivalent): shuffle, sort teacher desc, gather ---
    y_pred_s = y_pred[:, perm]
    y_true_s = y_true[:, perm]
    order = jnp.argsort(-y_true_s, axis=-1)                # descending sort indices
    y_true_sorted = jnp.take_along_axis(y_true_s, order, axis=1)
    preds_sorted = jnp.take_along_axis(y_pred_s, order, axis=1)
    # Fold the mask into the preds themselves: preds_sorted_by_true[mask] = -inf.
    preds_sorted = jnp.where(y_true_sorted == -1.0, -jnp.inf, preds_sorted)

    # --- pad to TPU-friendly shapes: lanes -> x128, batch -> tile multiple --------
    tb = _round_up(min(tile_b, _round_up(B, 8)), 8)
    Np = _round_up(N, _LANE)
    Bp = _round_up(B, tb)
    # TODO(synk): preds could stream as bf16 (-inf is representable) for ~2x HBM
    # bandwidth on v5e/v6e; kept f32 here for exact parity with the reference.
    preds_padded = jnp.pad(preds_sorted, ((0, Bp - B), (0, Np - N)),
                           constant_values=-jnp.inf)

    # Lower-triangular ones matrix (built once) for the reverse cumsum matmul.
    # bf16 is exact for {0, 1} and halves HBM read + VMEM residency.
    tri = (jnp.arange(Np)[:, None] >= jnp.arange(Np)[None, :]).astype(jnp.bfloat16)

    partials = _listmle_partials(tri, preds_padded, tb)    # (n_tiles, 1, 1); padded rows = 0
    return gamma_ * jnp.sum(partials) / B


def _reference_listmle(y_true, y_pred, perm, gamma_=1.0):
    """Pure-jnp reference mirroring the PyTorch code, for validation."""
    y_pred_s = y_pred[:, perm]
    y_true_s = y_true[:, perm]
    order = jnp.argsort(-y_true_s, axis=-1)
    y_true_sorted = jnp.take_along_axis(y_true_s, order, axis=1)
    mask = y_true_sorted == -1.0
    p = jnp.take_along_axis(y_pred_s, order, axis=1)
    p = jnp.where(mask, -jnp.inf, p)
    mx = jnp.max(p, axis=1, keepdims=True)
    d = p - mx
    cums = jnp.flip(jnp.cumsum(jnp.flip(jnp.exp(d), axis=1), axis=1), axis=1)
    obs = jnp.log(cums + EPS) - d
    obs = jnp.where(mask, 0.0, obs)
    return gamma_ * jnp.mean(jnp.sum(obs, axis=1))


if __name__ == "__main__":
    # Module hyper-params (tau is unused in the PyTorch forward; gamma_ scales loss).
    tau = 0.05          # kept for parity with ListMLE.__init__; not used in forward
    gamma_ = 0.10

    B, N = 16, 64
    key = jax.random.PRNGKey(0)
    k_t, k_s, k_perm = jax.random.split(key, 3)

    teacher = jax.random.normal(k_t, (B, N), dtype=jnp.float32)
    student = jax.random.normal(k_s, (B, N), dtype=jnp.float32)
    # Exercise the `y_true_sorted == -1` mask path on a few entries.
    teacher = teacher.at[:, -4:].set(-1.0)

    # torch.randperm(N) -> deterministic JAX permutation.
    perm = jax.random.permutation(k_perm, N)

    ref = _reference_listmle(teacher, student, perm, gamma_=gamma_)

    # tile_b=8 -> 2-tile grid: exercises the per-tile "parallel" partial outputs.
    loss_multi = listmle_loss(teacher, student, perm, gamma_=gamma_, tile_b=8)
    jax.block_until_ready(loss_multi)
    assert jnp.allclose(loss_multi, ref, rtol=1e-4, atol=1e-4), (loss_multi, ref)

    # Default tile size (capped at round_up(B, 8) = 16) -> single-tile grid path.
    loss_single = listmle_loss(teacher, student, perm, gamma_=gamma_)
    jax.block_until_ready(loss_single)
    assert jnp.allclose(loss_single, ref, rtol=1e-4, atol=1e-4), (loss_single, ref)

    print("KERNEL_OK")
</pallas_src>

<mosaic_0001>
module attributes {stable_mosaic.version = 11 : i64} {
  func.func @_listmle_kernel(%arg0: i32, %arg1: memref<128x128xbf16, #tpu.memory_space<vmem>>, %arg2: memref<8x128xf32, #tpu.memory_space<vmem>>, %arg3: memref<1x1x1xf32, #tpu.memory_space<vmem>>) attributes {dimension_semantics = [#tpu.dimension_semantics<parallel>], iteration_bounds = array<i64: 2>, scalar_prefetch = 0 : i64, scratch_operands = 0 : i64, tpu.core_type = #tpu.core_type<tc>, window_params = [{pipeline_mode = #tpu.pipeline_mode<synchronous>, transform_indices = @transform_0, window_bounds = array<i64: 128, 128>}, {transform_indices = @transform_1, window_bounds = array<i64: 8, 128>}, {transform_indices = @transform_2, window_bounds = array<i64: 1, 1, 1>}]} {
    %c0 = arith.constant 0 : index
    %c0_0 = arith.constant 0 : index
    %0 = vector.load %arg2[%c0, %c0_0] : memref<8x128xf32, #tpu.memory_space<vmem>>, vector<8x128xf32>
    %cst = arith.constant 0xFF800000 : f32
    %1 = vector.broadcast %cst : f32 to vector<8x128xf32>
    %2 = arith.cmpf oeq, %0, %1 : vector<8x128xf32>
    %cst_1 = arith.constant dense<0xFF800000> : vector<8xf32>
    %3 = vector.multi_reduction <maximumf>, %0, %cst_1 [1] : vector<8x128xf32> to vector<8xf32>
    %4 = vector.shape_cast %3 : vector<8xf32> to vector<8x1xf32>
    %cst_2 = arith.constant 0xFF800000 : f32
    %5 = vector.broadcast %cst_2 : f32 to vector<8x1xf32>
    %6 = arith.cmpf oeq, %4, %5 : vector<8x1xf32>
    %cst_3 = arith.constant 0.000000e+00 : f32
    %7 = vector.broadcast %cst_3 : f32 to vector<8x1xf32>
    %8 = arith.select %6, %7, %4 : vector<8x1xi1>, vector<8x1xf32>
    %9 = vector.broadcast %8 : vector<8x1xf32> to vector<8x128xf32>
    %10 = arith.subf %0, %9 : vector<8x128xf32>
    %11 = math.exp %10 : vector<8x128xf32>
    %c0_4 = arith.constant 0 : index
    %c0_5 = arith.constant 0 : index
    %12 = vector.load %arg1[%c0_4, %c0_5] : memref<128x128xbf16, #tpu.memory_space<vmem>>, vector<128x128xbf16>
    %13 = arith.extf %12 : vector<128x128xbf16> to vector<128x128xf32>
    %cst_6 = arith.constant dense<0.000000e+00> : vector<8x128xf32>
    %14 = tpu.matmul %11, %13, %cst_6 {dimension_numbers = #tpu.dot_dimension_numbers<[1], [0], [0], [1], [0, 0, 1, 1], [], []>, precision = #tpu.contract_precision<fp32>} : vector<8x128xf32>, vector<128x128xf32>, vector<8x128xf32> -> vector<8x128xf32>
    %cst_7 = arith.constant 1.000000e-07 : f32
    %15 = vector.broadcast %cst_7 : f32 to vector<8x128xf32>
    %16 = arith.addf %14, %15 : vector<8x128xf32>
    %17 = math.log %16 : vector<8x128xf32>
    %18 = arith.subf %17, %10 : vector<8x128xf32>
    %cst_8 = arith.constant 0.000000e+00 : f32
    %19 = vector.broadcast %cst_8 : f32 to vector<8x128xf32>
    %20 = arith.select %2, %19, %18 : vector<8x128xi1>, vector<8x128xf32>
    %cst_9 = arith.constant dense<0.000000e+00> : vector<8xf32>
    %21 = vector.multi_reduction <add>, %20, %cst_9 [1] : vector<8x128xf32> to vector<8xf32>
    %22 = vector.shape_cast %21 : vector<8xf32> to vector<8x1xf32>
    %cst_10 = arith.constant dense<0.000000e+00> : vector<1xf32>
    %23 = vector.multi_reduction <add>, %22, %cst_10 [0] : vector<8x1xf32> to vector<1xf32>
    %24 = vector.shape_cast %23 : vector<1xf32> to vector<1x1xf32>
    %25 = vector.shape_cast %24 : vector<1x1xf32> to vector<1x1x1xf32>
    %c0_11 = arith.constant 0 : index
    %c0_12 = arith.constant 0 : index
    %c0_13 = arith.constant 0 : index
    %26 = vector.load %arg3[%c0_11, %c0_12, %c0_13] : memref<1x1x1xf32, #tpu.memory_space<vmem>>, vector<1x1x1xf32>
    tpu.vector_store %arg3[%c0_11, %c0_12, %c0_13], %25 {strides = array<i32>} : memref<1x1x1xf32, #tpu.memory_space<vmem>>, vector<1x1x1xf32>,
    return
  }
  func.func @transform_0(%arg0: i32) -> (i32, i32) {
    %c0_i32 = arith.constant 0 : i32
    %c0_i32_0 = arith.constant 0 : i32
    %c0_i32_1 = arith.constant 0 : i32
    return %c0_i32, %c0_i32_0 : i32, i32
  }
  func.func @transform_1(%arg0: i32) -> (i32, i32) {
    %c0_i32 = arith.constant 0 : i32
    %c0_i32_0 = arith.constant 0 : i32
    return %arg0, %c0_i32 : i32, i32
  }
  func.func @transform_2(%arg0: i32) -> (i32, i32, i32) {
    %c0_i32 = arith.constant 0 : i32
    %c0_i32_0 = arith.constant 0 : i32
    %c0_i32_1 = arith.constant 0 : i32
    return %arg0, %c0_i32, %c0_i32_0 : i32, i32, i32
  }
}

</mosaic_0001>

<llo_original>
// kernel: listmle_loss.1
$region0: #{listmle_loss.1}
  #allocation0 [shape = 'u32[]', space=smem, size = 0x4, offset = 0x4, fixed_abs, tag = 'smem constant byte address 0x4 - core index']
  #allocation1 [shape = 'u32[144,128]{1,0:T(1,128)}', space=vmem, size = 0x12000, scoped, tag = 'internal scratch']
  %s0 = inlined_call_operand.vmem [shape: bf16[128,128], index: 0, kind: input, shape index: {}]
  %s1 = inlined_call_operand.vmem [shape: f32[16,128], index: 1, kind: input, shape index: {}]
  %s2 = inlined_call_operand.vmem [shape: f32[2,1,1], index: 2, kind: output, shape index: {}]
  %s3 = sld [smem:[#allocation0]]
  $region41: #{listmle_loss.1} parent=0
    _
  %s5 = ssub.s32 1, %s3
  %s6 = scalar_select 0, %s5, %s3
  loop: start=0, step=1, limit=4
  $region2: #{listmle_loss.1} parent=0 // loop_pre_header
    _
  $region3: #{listmle_loss.1} parent=0 // loop_header
    %s8 = sphi 0, %s12
    %p9 = scmp.ge.s32.totalorder %s8, 4
    %s16 = sphi 0, %s16
    %s18 = sphi 0, %s16
    %s19 = sphi 0, %s18
    %s33 = sphi 0, %s19
    %s39 = sphi 0, %s41
    %s42 = sphi 0, %s39
    %s43 = sphi 0, %s42
    %s59 = sphi 0, %s43
    %s65 = sphi 0, %s67
    %s68 = sphi 0, %s65
    %s69 = sphi 0, %s68
    %s85 = sphi 0, %s69
  $region4: #{listmle_loss.1} parent=0 // loop_header_branch
    %11 = sbr.rel (%p9) target = $region8
  $region5: #{listmle_loss.1} parent=0 // loop_body
    %s13 = ssub.s32 %s8, 1
    %s14 = ssub.s32 %s8, 2
    %s15 = sadd.s32 %s8, 1
    %s17 = sadd.s32 %s16, 1
    %p20 = scmp.eq.s32.totalorder %s8, 1
    %p21 = scmp.ne.s32.totalorder %s16, %s18
    %p22 = scmp.eq.s32.totalorder %s8, 0
    %p23 = por %p21, %p22
    %p24 = scmp.ne.s32.totalorder %s16, %s18
    %p25 = scmp.eq.s32.totalorder %s13, 1
    %p26 = por %p24, %p25
    %p27 = scmp.ne.s32.totalorder %s18, %s19
    %p28 = scmp.eq.s32.totalorder %s13, 0
    %p29 = por %p27, %p28
    %p30 = scmp.ne.s32.totalorder %s18, %s19
    %p31 = scmp.eq.s32.totalorder %s14, 1
    %p32 = por %p30, %p31
    %p34 = scmp.ne.s32.totalorder %s19, %s33
    %p35 = scmp.eq.s32.totalorder %s14, 0
    %p36 = por %p34, %p35
    %s37 = ssub.s32 %s8, %s15
    %p38 = scmp.eq.s32.totalorder %s37, 0
    %s40 = sadd.s32 %s39, 1
    %s41 = scalar_select %p38, %s39, %s40
    %p44 = pneg %p38
    %p45 = scmp.eq.s32.totalorder %s8, 1
    %p46 = por %p44, %p45
    %p47 = scmp.ne.s32.totalorder %s39, %s42
    %p48 = scmp.eq.s32.totalorder %s8, 0
    %p49 = por %p47, %p48
    %p50 = scmp.ne.s32.totalorder %s39, %s42
    %p51 = scmp.eq.s32.totalorder %s13, 1
    %p52 = por %p50, %p51
    %p53 = scmp.ne.s32.totalorder %s42, %s43
    %p54 = scmp.eq.s32.totalorder %s13, 0
    %p55 = por %p53, %p54
    %p56 = scmp.ne.s32.totalorder %s42, %s43
    %p57 = scmp.eq.s32.totalorder %s14, 1
    %p58 = por %p56, %p57
    %p60 = scmp.ne.s32.totalorder %s43, %s59
    %p61 = scmp.eq.s32.totalorder %s14, 0
    %p62 = por %p60, %p61
    %s63 = ssub.s32 %s8, %s15
    %p64 = scmp.eq.s32.totalorder %s63, 0
    %s66 = sadd.s32 %s65, 1
    %s67 = scalar_select %p64, %s65, %s66
    %p70 = pneg %p64
    %p71 = scmp.eq.s32.totalorder %s8, 1
    %p72 = por %p70, %p71
    %p73 = scmp.ne.s32.totalorder %s65, %s68
    %p74 = scmp.eq.s32.totalorder %s8, 0
    %p75 = por %p73, %p74
    %p76 = scmp.ne.s32.totalorder %s65, %s68
    %p77 = scmp.eq.s32.totalorder %s13, 1
    %p78 = por %p76, %p77
    %p79 = scmp.ne.s32.totalorder %s68, %s69
    %p80 = scmp.eq.s32.totalorder %s13, 0
    %p81 = por %p79, %p80
    %p82 = scmp.ne.s32.totalorder %s68, %s69
    %p83 = scmp.eq.s32.totalorder %s14, 1
    %p84 = por %p82, %p83
    %p86 = scmp.ne.s32.totalorder %s69, %s85
    %p87 = scmp.eq.s32.totalorder %s14, 0
    %p88 = por %p86, %p87
    %p89 = scmp.le.s32.totalorder 1, %s8
    %p90 = scmp.lt.s32.totalorder %s8, 3
    %p91 = pnand %p89, %p90
    %p92 = pneg %p91
    // Predicated region
    $region9: #{listmle_loss.1} parent=5 // pred_check
      _
    $region10: #{listmle_loss.1} parent=5 // pred_check_branch
      %94 = sbr.rel (%p91) target = $region12
    $region11: #{listmle_loss.1} parent=5 // pred_region
      %s95 = ssub.s32 %s8, 1
      // Predicated region
      $region13: #{listmle_loss.1} parent=11 // pred_check
        %p96 = pneg %p29
      $region14: #{listmle_loss.1} parent=11 // pred_check_branch
        %98 = sbr.rel (%p96) target = $region16
      $region15: #{listmle_loss.1} parent=11 // pred_region
        _
      $region16: #{listmle_loss.1} parent=11 // pred_fallthru
        _
    $region12: #{listmle_loss.1} parent=5 // pred_fallthru
      _
    %p99 = scmp.lt.s32.totalorder %s8, 2
    // Predicated region
    $region17: #{listmle_loss.1} parent=5 // pred_check
      %p100 = pneg %p99
    $region18: #{listmle_loss.1} parent=5 // pred_check_branch
      %102 = sbr.rel (%p100) target = $region20
    $region19: #{listmle_loss.1} parent=5 // pred_region
      // Predicated region
      $region21: #{listmle_loss.1} parent=19 // pred_check
        %p103 = pneg %p49
      $region22: #{listmle_loss.1} parent=19 // pred_check_branch
        %105 = sbr.rel (%p103) target = $region24
      $region23: #{listmle_loss.1} parent=19 // pred_region
        %p106 = scmp.lt.s32.totalorder %s8, 1
        %s107 = scalar_select %p106, %s8, 1
        %s108 = smul.addr %s107, 8
        %s109 = scalar_lea.vmem %s1, %s108
      $region24: #{listmle_loss.1} parent=19 // pred_fallthru
        _
    $region20: #{listmle_loss.1} parent=5 // pred_fallthru
      _
    %p110 = scmp.le.s32.totalorder 1, %s8
    %p111 = scmp.lt.s32.totalorder %s8, 3
    %p112 = pnand %p110, %p111
    %p113 = pneg %p112
    // Predicated region
    $region25: #{listmle_loss.1} parent=5 // pred_check
      _
    $region26: #{listmle_loss.1} parent=5 // pred_check_branch
      %115 = sbr.rel (%p112) target = $region28
    $region27: #{listmle_loss.1} parent=5 // pred_region
      %s116 = ssub.s32 %s8, 1
      %p117 = pneg %p29
      %p118 = pneg %p26
      %p119 = scmp.lt.s32.totalorder %s13, 1
      %s120 = scalar_select %p119, %s13, 1
      %s121 = smul.addr %s120, 8
      %s122 = scalar_lea.vmem %s1, %s121
      %p123 = pneg %p55
      %p124 = pneg %p52
      %p125 = pneg %p81
      %p126 = pneg %p78
      %p127 = scmp.lt.s32.totalorder %s13, 1
      %s128 = scalar_select %p127, %s13, 1
      %s129 = scalar_lea.vmem %s2, %s128
      %p130 = scmp.lt.s32.totalorder %s13, 1
      %s131 = scalar_select %p130, %s13, 1
      %s132 = smul.addr %s131, 8
      %s133 = scalar_lea.vmem %s1, %s132
      %p134 = scmp.lt.s32.totalorder %s13, 1
      %s135 = scalar_select %p134, %s13, 1
      %s136 = scalar_lea.vmem %s2, %s135
      %v137 = vld [vmem:[%s133] sm:$0xff]
      %vm138 = vcmp.eq.f32.partialorder %v137, -inf
      %139 = vmax.xlane.f32.xlu0 %v137
      %v140 = vpop.xlane.xlu0 %139
      %vm141 = vcmp.eq.f32.partialorder %v140, -inf
      %v142 = vsel %vm141, 0.0, %v140
      %v143 = vsub.f32 %v137, %v142
      %v144 = vmul.f32 %v143, 1.442695
      %v145 = vpow.pop %v144
      %v146 = vld [vmem:[%s0] sm:$0xf]
      %v147 = vld [vmem:[%s0 + $0x4] sm:$0xf]
      %v148 = vld [vmem:[%s0 + $0x8] sm:$0xf]
      %v149 = vld [vmem:[%s0 + $0xc] sm:$0xf]
      %v150 = vld [vmem:[%s0 + $0x10] sm:$0xf]
      %v151 = vld [vmem:[%s0 + $0x14] sm:$0xf]
      %v152 = vld [vmem:[%s0 + $0x18] sm:$0xf]
      %v153 = vld [vmem:[%s0 + $0x1c] sm:$0xf]
      %v154 = vld [vmem:[%s0 + $0x20] sm:$0xf]
      %v155 = vld [vmem:[%s0 + $0x24] sm:$0xf]
      %v156 = vld [vmem:[%s0 + $0x28] sm:$0xf]
      %v157 = vld [vmem:[%s0 + $0x2c] sm:$0xf]
      %v158 = vld [vmem:[%s0 + $0x30] sm:$0xf]
      %v159 = vld [vmem:[%s0 + $0x34] sm:$0xf]
      %v160 = vld [vmem:[%s0 + $0x38] sm:$0xf]
      %v161 = vld [vmem:[%s0 + $0x3c] sm:$0xf]
      %v162 = vunpack.c.l.bf16 %v146
      %v163 = vunpack.c.l.bf16 %v147
      %v164 = vunpack.c.l.bf16 %v148
      %v165 = vunpack.c.l.bf16 %v149
      %v166 = vunpack.c.l.bf16 %v150
      %v167 = vunpack.c.l.bf16 %v151
      %v168 = vunpack.c.l.bf16 %v152
      %v169 = vunpack.c.l.bf16 %v153
      %v170 = vunpack.c.l.bf16 %v154
      %v171 = vunpack.c.l.bf16 %v155
      %v172 = vunpack.c.l.bf16 %v156
      %v173 = vunpack.c.l.bf16 %v157
      %v174 = vunpack.c.l.bf16 %v158
      %v175 = vunpack.c.l.bf16 %v159
      %v176 = vunpack.c.l.bf16 %v160
      %v177 = vunpack.c.l.bf16 %v161
      %178 = vmatprep.subr.mxu0 0.0
      %179 = vmatpush1.msra.mxu0 %v162
      %180 = vmatprep.subr.mxu0 0.0
      %181 = vmatpush1.msra.mxu0 %v163
      %182 = vmatprep.subr.mxu0 0.0
      %183 = vmatpush1.msra.mxu0 %v164
      %184 = vmatprep.subr.mxu0 0.0
      %185 = vmatpush1.msra.mxu0 %v165
      %186 = vmatprep.subr.mxu0 0.0
      %187 = vmatpush1.msra.mxu0 %v166
      %188 = vmatprep.subr.mxu0 0.0
      %189 = vmatpush1.msra.mxu0 %v167
      %190 = vmatprep.subr.mxu0 0.0
      %191 = vmatpush1.msra.mxu0 %v168
      %192 = vmatprep.subr.mxu0 0.0
      %193 = vmatpush1.msra.mxu0 %v169
      %194 = vmatprep.subr.mxu0 0.0
      %195 = vmatpush1.msra.mxu0 %v170
      %196 = vmatprep.subr.mxu0 0.0
      %197 = vmatpush1.msra.mxu0 %v171
      %198 = vmatprep.subr.mxu0 0.0
      %199 = vmatpush1.msra.mxu0 %v172
      %200 = vmatprep.subr.mxu0 0.0
      %201 = vmatpush1.msra.mxu0 %v173
      %202 = vmatprep.subr.mxu0 0.0
      %203 = vmatpush1.msra.mxu0 %v174
      %204 = vmatprep.subr.mxu0 0.0
      %205 = vmatpush1.msra.mxu0 %v175
      %206 = vmatprep.subr.mxu0 0.0
      %207 = vmatpush1.msra.mxu0 %v176
      %208 = vmatprep.subr.mxu0 0.0
      %209 = vmatpush1.msra.mxu0 %v177
      %210 = vmatprep.subr.mxu0 0.0
      %211 = vmatpush1.msra.mxu0 0.0
      %212 = vmatprep.subr.mxu0 0.0
      %213 = vmatpush1.msra.mxu0 0.0
      %214 = vmatprep.subr.mxu0 0.0
      %215 = vmatpush1.msra.mxu0 0.0
      %216 = vmatprep.subr.mxu0 0.0
      %217 = vmatpush1.msra.mxu0 0.0
      %218 = vmatprep.subr.mxu0 0.0
      %219 = vmatpush1.msra.mxu0 0.0
      %220 = vmatprep.subr.mxu0 0.0
      %221 = vmatpush1.msra.mxu0 0.0
      %222 = vmatprep.subr.mxu0 0.0
      %223 = vmatpush1.msra.mxu0 0.0
      %224 = vmatprep.subr.mxu0 0.0
      %225 = vmatpush1.msra.mxu0 0.0
      %226 = vmatprep.subr.mxu0 0.0
      %227 = vmatpush1.msra.mxu0 0.0
      %228 = vmatprep.subr.mxu0 0.0
      %229 = vmatpush1.msra.mxu0 0.0
      %230 = vmatprep.subr.mxu0 0.0
      %231 = vmatpush1.msra.mxu0 0.0
      %232 = vmatprep.subr.mxu0 0.0
      %233 = vmatpush1.msra.mxu0 0.0
      %234 = vmatprep.subr.mxu0 0.0
      %235 = vmatpush1.msra.mxu0 0.0
      %236 = vmatprep.subr.mxu0 0.0
      %237 = vmatpush1.msra.mxu0 0.0
      %238 = vmatprep.subr.mxu0 0.0
      %239 = vmatpush1.msra.mxu0 0.0
      %240 = vmatprep.subr.mxu0 0.0
      %241 = vmatpush1.msra.mxu0 0.0
      %242 = vmatprep.mubr.f32.mxu0 0.0
      %v243 = vand.u32 %v145, 4294901760
      %v244 = vsub.f32 %v145, %v243
      %v245 = vand.u32 %v244, 4294901760
      %v246 = vsub.f32 %v244, %v245
      %v247 = vand.u32 %v246, 4294901760
      %248 = vmatmul.mubr.f32.gmra.mrb[0].mxu0 %v247
      %v249 = vpop.f32.mrb[0].mxu0
      %v250 = vadd.f32 1e-07, %v249
      %v251 = vpop.f32.mrb[0].mxu0
      %252 = vdwg.mxu0
      %253 = vmatprep.subr.mxu0 0.0
      %v254 = vsub.f32 %v162, %v162
      %v255 = vand.u32 %v254, 4294901760
      %v256 = vsub.f32 %v254, %v255
      %v257 = vand.u32 %v256, 4294901760
      %258 = vmatpush1.msra.mxu0 %v257
      %259 = vmatprep.subr.mxu0 0.0
      %v260 = vsub.f32 %v163, %v163
      %v261 = vand.u32 %v260, 4294901760
      %v262 = vsub.f32 %v260, %v261
      %v263 = vand.u32 %v262, 4294901760
      %264 = vmatpush1.msra.mxu0 %v263
      %265 = vmatprep.subr.mxu0 0.0
      %v266 = vsub.f32 %v164, %v164
      %v267 = vand.u32 %v266, 4294901760
      %v268 = vsub.f32 %v266, %v267
      %v269 = vand.u32 %v268, 4294901760
      %270 = vmatpush1.msra.mxu0 %v269
      %271 = vmatprep.subr.mxu0 0.0
      %v272 = vsub.f32 %v165, %v165
      %v273 = vand.u32 %v272, 4294901760
      %v274 = vsub.f32 %v272, %v273
      %v275 = vand.u32 %v274, 4294901760
      %276 = vmatpush1.msra.mxu0 %v275
      %277 = vmatprep.subr.mxu0 0.0
      %v278 = vsub.f32 %v166, %v166
      %v279 = vand.u32 %v278, 4294901760
      %v280 = vsub.f32 %v278, %v279
      %v281 = vand.u32 %v280, 4294901760
      %282 = vmatpush1.msra.mxu0 %v281
      %283 = vmatprep.subr.mxu0 0.0
      %v284 = vsub.f32 %v167, %v167
      %v285 = vand.u32 %v284, 4294901760
      %v286 = vsub.f32 %v284, %v285
      %v287 = vand.u32 %v286, 4294901760
      %288 = vmatpush1.msra.mxu0 %v287
      %289 = vmatprep.subr.mxu0 0.0
      %v290 = vsub.f32 %v168, %v168
      %v291 = vand.u32 %v290, 4294901760
      %v292 = vsub.f32 %v290, %v291
      %v293 = vand.u32 %v292, 4294901760
      %294 = vmatpush1.msra.mxu0 %v293
      %295 = vmatprep.subr.mxu0 0.0
      %v296 = vsub.f32 %v169, %v169
      %v297 = vand.u32 %v296, 4294901760
      %v298 = vsub.f32 %v296, %v297
      %v299 = vand.u32 %v298, 4294901760
      %300 = vmatpush1.msra.mxu0 %v299
      %301 = vmatprep.subr.mxu0 0.0
      %v302 = vsub.f32 %v170, %v170
      %v303 = vand.u32 %v302, 4294901760
      %v304 = vsub.f32 %v302, %v303
      %v305 = vand.u32 %v304, 4294901760
      %306 = vmatpush1.msra.mxu0 %v305
      %307 = vmatprep.subr.mxu0 0.0
      %v308 = vsub.f32 %v171, %v171
      %v309 = vand.u32 %v308, 4294901760
      %v310 = vsub.f32 %v308, %v309
      %v311 = vand.u32 %v310, 4294901760
      %312 = vmatpush1.msra.mxu0 %v311
      %313 = vmatprep.subr.mxu0 0.0
      %v314 = vsub.f32 %v172, %v172
      %v315 = vand.u32 %v314, 4294901760
      %v316 = vsub.f32 %v314, %v315
      %v317 = vand.u32 %v316, 4294901760
      %318 = vmatpush1.msra.mxu0 %v317
      %319 = vmatprep.subr.mxu0 0.0
      %v320 = vsub.f32 %v173, %v173
      %v321 = vand.u32 %v320, 4294901760
      %v322 = vsub.f32 %v320, %v321
      %v323 = vand.u32 %v322, 4294901760
      %324 = vmatpush1.msra.mxu0 %v323
      %325 = vmatprep.subr.mxu0 0.0
      %v326 = vsub.f32 %v174, %v174
      %v327 = vand.u32 %v326, 4294901760
      %v328 = vsub.f32 %v326, %v327
      %v329 = vand.u32 %v328, 4294901760
      %330 = vmatpush1.msra.mxu0 %v329
      %331 = vmatprep.subr.mxu0 0.0
      %v332 = vsub.f32 %v175, %v175
      %v333 = vand.u32 %v332, 4294901760
      %v334 = vsub.f32 %v332, %v333
      %v335 = vand.u32 %v334, 4294901760
      %336 = vmatpush1.msra.mxu0 %v335
      %337 = vmatprep.subr.mxu0 0.0
      %v338 = vsub.f32 %v176, %v176
      %v339 = vand.u32 %v338, 4294901760
      %v340 = vsub.f32 %v338, %v339
      %v341 = vand.u32 %v340, 4294901760
      %342 = vmatpush1.msra.mxu0 %v341
      %343 = vmatprep.subr.mxu0 0.0
      %v344 = vsub.f32 %v177, %v177
      %v345 = vand.u32 %v344, 4294901760
      %v346 = vsub.f32 %v344, %v345
      %v347 = vand.u32 %v346, 4294901760
      %348 = vmatpush1.msra.mxu0 %v347
      %349 = vmatprep.subr.mxu0 0.0
      %350 = vmatpush1.msra.mxu0 0.0
      %351 = vmatprep.subr.mxu0 0.0
      %352 = vmatpush1.msra.mxu0 0.0
      %353 = vmatprep.subr.mxu0 0.0
      %354 = vmatpush1.msra.mxu0 0.0
      %355 = vmatprep.subr.mxu0 0.0
      %356 = vmatpush1.msra.mxu0 0.0
      %357 = vmatprep.subr.mxu0 0.0
      %358 = vmatpush1.msra.mxu0 0.0
      %359 = vmatprep.subr.mxu0 0.0
      %360 = vmatpush1.msra.mxu0 0.0
      %361 = vmatprep.subr.mxu0 0.0
      %362 = vmatpush1.msra.mxu0 0.0
      %363 = vmatprep.subr.mxu0 0.0
      %364 = vmatpush1.msra.mxu0 0.0
      %365 = vmatprep.subr.mxu0 0.0
      %366 = vmatpush1.msra.mxu0 0.0
      %367 = vmatprep.subr.mxu0 0.0
      %368 = vmatpush1.msra.mxu0 0.0
      %369 = vmatprep.subr.mxu0 0.0
      %370 = vmatpush1.msra.mxu0 0.0
      %371 = vmatprep.subr.mxu0 0.0
      %372 = vmatpush1.msra.mxu0 0.0
      %373 = vmatprep.subr.mxu0 0.0
      %374 = vmatpush1.msra.mxu0 0.0
      %375 = vmatprep.subr.mxu0 0.0
      %376 = vmatpush1.msra.mxu0 0.0
      %377 = vmatprep.subr.mxu0 0.0
      %378 = vmatpush1.msra.mxu0 0.0
      %379 = vmatprep.subr.mxu0 0.0
      %380 = vmatpush1.msra.mxu0 0.0
      %381 = vmatprep.mubr.f32.mxu0 0.0
      %v382 = vand.u32 %v145, 4294901760
      %383 = vmatmul.mubr.f32.gmra.mrb[0].mxu0 %v382
      %v384 = vpop.f32.mrb[0].mxu0
      %v385 = vadd.f32 %v250, %v384
      %v386 = vpop.f32.mrb[0].mxu0
      %387 = vdwg.mxu0
      %388 = vmatprep.subr.mxu0 0.0
      %v389 = vsub.f32 %v162, %v162
      %390 = vmatpush1.msra.mxu0 %v389
      %391 = vmatprep.subr.mxu0 0.0
      %v392 = vsub.f32 %v163, %v163
      %393 = vmatpush1.msra.mxu0 %v392
      %394 = vmatprep.subr.mxu0 0.0
      %v395 = vsub.f32 %v164, %v164
      %396 = vmatpush1.msra.mxu0 %v395
      %397 = vmatprep.subr.mxu0 0.0
      %v398 = vsub.f32 %v165, %v165
      %399 = vmatpush1.msra.mxu0 %v398
      %400 = vmatprep.subr.mxu0 0.0
      %v401 = vsub.f32 %v166, %v166
      %402 = vmatpush1.msra.mxu0 %v401
      %403 = vmatprep.subr.mxu0 0.0
      %v404 = vsub.f32 %v167, %v167
      %405 = vmatpush1.msra.mxu0 %v404
      %406 = vmatprep.subr.mxu0 0.0
      %v407 = vsub.f32 %v168, %v168
      %408 = vmatpush1.msra.mxu0 %v407
      %409 = vmatprep.subr.mxu0 0.0
      %v410 = vsub.f32 %v169, %v169
      %411 = vmatpush1.msra.mxu0 %v410
      %412 = vmatprep.subr.mxu0 0.0
      %v413 = vsub.f32 %v170, %v170
      %414 = vmatpush1.msra.mxu0 %v413
      %415 = vmatprep.subr.mxu0 0.0
      %v416 = vsub.f32 %v171, %v171
      %417 = vmatpush1.msra.mxu0 %v416
      %418 = vmatprep.subr.mxu0 0.0
      %v419 = vsub.f32 %v172, %v172
      %420 = vmatpush1.msra.mxu0 %v419
      %421 = vmatprep.subr.mxu0 0.0
      %v422 = vsub.f32 %v173, %v173
      %423 = vmatpush1.msra.mxu0 %v422
      %424 = vmatprep.subr.mxu0 0.0
      %v425 = vsub.f32 %v174, %v174
      %426 = vmatpush1.msra.mxu0 %v425
      %427 = vmatprep.subr.mxu0 0.0
      %v428 = vsub.f32 %v175, %v175
      %429 = vmatpush1.msra.mxu0 %v428
      %430 = vmatprep.subr.mxu0 0.0
      %v431 = vsub.f32 %v176, %v176
      %432 = vmatpush1.msra.mxu0 %v431
      %433 = vmatprep.subr.mxu0 0.0
      %v434 = vsub.f32 %v177, %v177
      %435 = vmatpush1.msra.mxu0 %v434
      %436 = vmatprep.subr.mxu0 0.0
      %437 = vmatpush1.msra.mxu0 0.0
      %438 = vmatprep.subr.mxu0 0.0
      %439 = vmatpush1.msra.mxu0 0.0
      %440 = vmatprep.subr.mxu0 0.0
      %441 = vmatpush1.msra.mxu0 0.0
      %442 = vmatprep.subr.mxu0 0.0
      %443 = vmatpush1.msra.mxu0 0.0
      %444 = vmatprep.subr.mxu0 0.0
      %445 = vmatpush1.msra.mxu0 0.0
      %446 = vmatprep.subr.mxu0 0.0
      %447 = vmatpush1.msra.mxu0 0.0
      %448 = vmatprep.subr.mxu0 0.0
      %449 = vmatpush1.msra.mxu0 0.0
      %450 = vmatprep.subr.mxu0 0.0
      %451 = vmatpush1.msra.mxu0 0.0
      %452 = vmatprep.subr.mxu0 0.0
      %453 = vmatpush1.msra.mxu0 0.0
      %454 = vmatprep.subr.mxu0 0.0
      %455 = vmatpush1.msra.mxu0 0.0
      %456 = vmatprep.subr.mxu0 0.0
      %457 = vmatpush1.msra.mxu0 0.0
      %458 = vmatprep.subr.mxu0 0.0
      %459 = vmatpush1.msra.mxu0 0.0
      %460 = vmatprep.subr.mxu0 0.0
      %461 = vmatpush1.msra.mxu0 0.0
      %462 = vmatprep.subr.mxu0 0.0
      %463 = vmatpush1.msra.mxu0 0.0
      %464 = vmatprep.subr.mxu0 0.0
      %465 = vmatpush1.msra.mxu0 0.0
      %466 = vmatprep.subr.mxu0 0.0
      %467 = vmatpush1.msra.mxu0 0.0
      %468 = vmatprep.mubr.f32.mxu0 0.0
      %v469 = vand.u32 %v145, 4294901760
      %v470 = vsub.f32 %v145, %v469
      %471 = vmatmul.mubr.f32.gmra.mrb[0].mxu0 %v470
      %v472 = vpop.f32.mrb[0].mxu0
      %v473 = vadd.f32 %v385, %v472
      %v474 = vpop.f32.mrb[0].mxu0
      %475 = vdwg.mxu0
      %476 = vmatprep.subr.mxu0 0.0
      %477 = vmatpush1.msra.mxu0 %v162
      %478 = vmatprep.subr.mxu0 0.0
      %479 = vmatpush1.msra.mxu0 %v163
      %480 = vmatprep.subr.mxu0 0.0
      %481 = vmatpush1.msra.mxu0 %v164
      %482 = vmatprep.subr.mxu0 0.0
      %483 = vmatpush1.msra.mxu0 %v165
      %484 = vmatprep.subr.mxu0 0.0
      %485 = vmatpush1.msra.mxu0 %v166
      %486 = vmatprep.subr.mxu0 0.0
      %487 = vmatpush1.msra.mxu0 %v167
      %488 = vmatprep.subr.mxu0 0.0
      %489 = vmatpush1.msra.mxu0 %v168
      %490 = vmatprep.subr.mxu0 0.0
      %491 = vmatpush1.msra.mxu0 %v169
      %492 = vmatprep.subr.mxu0 0.0
      %493 = vmatpush1.msra.mxu0 %v170
      %494 = vmatprep.subr.mxu0 0.0
      %495 = vmatpush1.msra.mxu0 %v171
      %496 = vmatprep.subr.mxu0 0.0
      %497 = vmatpush1.msra.mxu0 %v172
      %498 = vmatprep.subr.mxu0 0.0
      %499 = vmatpush1.msra.mxu0 %v173
      %500 = vmatprep.subr.mxu0 0.0
      %501 = vmatpush1.msra.mxu0 %v174
      %502 = vmatprep.subr.mxu0 0.0
      %503 = vmatpush1.msra.mxu0 %v175
      %504 = vmatprep.subr.mxu0 0.0
      %505 = vmatpush1.msra.mxu0 %v176
      %506 = vmatprep.subr.mxu0 0.0
      %507 = vmatpush1.msra.mxu0 %v177
      %508 = vmatprep.subr.mxu0 0.0
      %509 = vmatpush1.msra.mxu0 0.0
      %510 = vmatprep.subr.mxu0 0.0
      %511 = vmatpush1.msra.mxu0 0.0
      %512 = vmatprep.subr.mxu0 0.0
      %513 = vmatpush1.msra.mxu0 0.0
      %514 = vmatprep.subr.mxu0 0.0
      %515 = vmatpush1.msra.mxu0 0.0
      %516 = vmatprep.subr.mxu0 0.0
      %517 = vmatpush1.msra.mxu0 0.0
      %518 = vmatprep.subr.mxu0 0.0
      %519 = vmatpush1.msra.mxu0 0.0
      %520 = vmatprep.subr.mxu0 0.0
      %521 = vmatpush1.msra.mxu0 0.0
      %522 = vmatprep.subr.mxu0 0.0
      %523 = vmatpush1.msra.mxu0 0.0
      %524 = vmatprep.subr.mxu0 0.0
      %525 = vmatpush1.msra.mxu0 0.0
      %526 = vmatprep.subr.mxu0 0.0
      %527 = vmatpush1.msra.mxu0 0.0
      %528 = vmatprep.subr.mxu0 0.0
      %529 = vmatpush1.msra.mxu0 0.0
      %530 = vmatprep.subr.mxu0 0.0
      %531 = vmatpush1.msra.mxu0 0.0
      %532 = vmatprep.subr.mxu0 0.0
      %533 = vmatpush1.msra.mxu0 0.0
      %534 = vmatprep.subr.mxu0 0.0
      %535 = vmatpush1.msra.mxu0 0.0
      %536 = vmatprep.subr.mxu0 0.0
      %537 = vmatpush1.msra.mxu0 0.0
      %538 = vmatprep.subr.mxu0 0.0
      %539 = vmatpush1.msra.mxu0 0.0
      %540 = vmatprep.mubr.f32.mxu0 0.0
      %v541 = vand.u32 %v145, 4294901760
      %v542 = vsub.f32 %v145, %v541
      %v543 = vand.u32 %v542, 4294901760
      %544 = vmatmul.mubr.f32.gmra.mrb[0].mxu0 %v543
      %v545 = vpop.f32.mrb[0].mxu0
      %v546 = vadd.f32 %v473, %v545
      %v547 = vpop.f32.mrb[0].mxu0
      %548 = vdwg.mxu0
      %549 = vmatprep.subr.mxu0 0.0
      %v550 = vsub.f32 %v162, %v162
      %v551 = vand.u32 %v550, 4294901760
      %552 = vmatpush1.msra.mxu0 %v551
      %553 = vmatprep.subr.mxu0 0.0
      %v554 = vsub.f32 %v163, %v163
      %v555 = vand.u32 %v554, 4294901760
      %556 = vmatpush1.msra.mxu0 %v555
      %557 = vmatprep.subr.mxu0 0.0
      %v558 = vsub.f32 %v164, %v164
      %v559 = vand.u32 %v558, 4294901760
      %560 = vmatpush1.msra.mxu0 %v559
      %561 = vmatprep.subr.mxu0 0.0
      %v562 = vsub.f32 %v165, %v165
      %v563 = vand.u32 %v562, 4294901760
      %564 = vmatpush1.msra.mxu0 %v563
      %565 = vmatprep.subr.mxu0 0.0
      %v566 = vsub.f32 %v166, %v166
      %v567 = vand.u32 %v566, 4294901760
      %568 = vmatpush1.msra.mxu0 %v567
      %569 = vmatprep.subr.mxu0 0.0
      %v570 = vsub.f32 %v167, %v167
      %v571 = vand.u32 %v570, 4294901760
      %572 = vmatpush1.msra.mxu0 %v571
      %573 = vmatprep.subr.mxu0 0.0
      %v574 = vsub.f32 %v168, %v168
      %v575 = vand.u32 %v574, 4294901760
      %576 = vmatpush1.msra.mxu0 %v575
      %577 = vmatprep.subr.mxu0 0.0
      %v578 = vsub.f32 %v169, %v169
      %v579 = vand.u32 %v578, 4294901760
      %580 = vmatpush1.msra.mxu0 %v579
      %581 = vmatprep.subr.mxu0 0.0
      %v582 = vsub.f32 %v170, %v170
      %v583 = vand.u32 %v582, 4294901760
      %584 = vmatpush1.msra.mxu0 %v583
      %585 = vmatprep.subr.mxu0 0.0
      %v586 = vsub.f32 %v171, %v171
      %v587 = vand.u32 %v586, 4294901760
      %588 = vmatpush1.msra.mxu0 %v587
      %589 = vmatprep.subr.mxu0 0.0
      %v590 = vsub.f32 %v172, %v172
      %v591 = vand.u32 %v590, 4294901760
      %592 = vmatpush1.msra.mxu0 %v591
      %593 = vmatprep.subr.mxu0 0.0
      %v594 = vsub.f32 %v173, %v173
      %v595 = vand.u32 %v594, 4294901760
      %596 = vmatpush1.msra.mxu0 %v595
      %597 = vmatprep.subr.mxu0 0.0
      %v598 = vsub.f32 %v174, %v174
      %v599 = vand.u32 %v598, 4294901760
      %600 = vmatpush1.msra.mxu0 %v599
      %601 = vmatprep.subr.mxu0 0.0
      %v602 = vsub.f32 %v175, %v175
      %v603 = vand.u32 %v602, 4294901760
      %604 = vmatpush1.msra.mxu0 %v603
      %605 = vmatprep.subr.mxu0 0.0
      %v606 = vsub.f32 %v176, %v176
      %v607 = vand.u32 %v606, 4294901760
      %608 = vmatpush1.msra.mxu0 %v607
      %609 = vmatprep.subr.mxu0 0.0
      %v610 = vsub.f32 %v177, %v177
      %v611 = vand.u32 %v610, 4294901760
      %612 = vmatpush1.msra.mxu0 %v611
      %613 = vmatprep.subr.mxu0 0.0
      %614 = vmatpush1.msra.mxu0 0.0
      %615 = vmatprep.subr.mxu0 0.0
      %616 = vmatpush1.msra.mxu0 0.0
      %617 = vmatprep.subr.mxu0 0.0
      %618 = vmatpush1.msra.mxu0 0.0
      %619 = vmatprep.subr.mxu0 0.0
      %620 = vmatpush1.msra.mxu0 0.0
      %621 = vmatprep.subr.mxu0 0.0
      %622 = vmatpush1.msra.mxu0 0.0
      %623 = vmatprep.subr.mxu0 0.0
      %624 = vmatpush1.msra.mxu0 0.0
      %625 = vmatprep.subr.mxu0 0.0
      %626 = vmatpush1.msra.mxu0 0.0
      %627 = vmatprep.subr.mxu0 0.0
      %628 = vmatpush1.msra.mxu0 0.0
      %629 = vmatprep.subr.mxu0 0.0
      %630 = vmatpush1.msra.mxu0 0.0
      %631 = vmatprep.subr.mxu0 0.0
      %632 = vmatpush1.msra.mxu0 0.0
      %633 = vmatprep.subr.mxu0 0.0
      %634 = vmatpush1.msra.mxu0 0.0
      %635 = vmatprep.subr.mxu0 0.0
      %636 = vmatpush1.msra.mxu0 0.0
      %637 = vmatprep.subr.mxu0 0.0
      %638 = vmatpush1.msra.mxu0 0.0
      %639 = vmatprep.subr.mxu0 0.0
      %640 = vmatpush1.msra.mxu0 0.0
      %641 = vmatprep.subr.mxu0 0.0
      %642 = vmatpush1.msra.mxu0 0.0
      %643 = vmatprep.subr.mxu0 0.0
      %644 = vmatpush1.msra.mxu0 0.0
      %645 = vmatprep.mubr.f32.mxu0 0.0
      %v646 = vand.u32 %v145, 4294901760
      %647 = vmatmul.mubr.f32.gmra.mrb[0].mxu0 %v646
      %v648 = vpop.f32.mrb[0].mxu0
      %v649 = vadd.f32 %v546, %v648
      %v650 = vpop.f32.mrb[0].mxu0
      %651 = vdwg.mxu0
      %652 = vmatprep.subr.mxu0 0.0
      %653 = vmatpush1.msra.mxu0 %v162
      %654 = vmatprep.subr.mxu0 0.0
      %655 = vmatpush1.msra.mxu0 %v163
      %656 = vmatprep.subr.mxu0 0.0
      %657 = vmatpush1.msra.mxu0 %v164
      %658 = vmatprep.subr.mxu0 0.0
      %659 = vmatpush1.msra.mxu0 %v165
      %660 = vmatprep.subr.mxu0 0.0
      %661 = vmatpush1.msra.mxu0 %v166
      %662 = vmatprep.subr.mxu0 0.0
      %663 = vmatpush1.msra.mxu0 %v167
      %664 = vmatprep.subr.mxu0 0.0
      %665 = vmatpush1.msra.mxu0 %v168
      %666 = vmatprep.subr.mxu0 0.0
      %667 = vmatpush1.msra.mxu0 %v169
      %668 = vmatprep.subr.mxu0 0.0
      %669 = vmatpush1.msra.mxu0 %v170
      %670 = vmatprep.subr.mxu0 0.0
      %671 = vmatpush1.msra.mxu0 %v171
      %672 = vmatprep.subr.mxu0 0.0
      %673 = vmatpush1.msra.mxu0 %v172
      %674 = vmatprep.subr.mxu0 0.0
      %675 = vmatpush1.msra.mxu0 %v173
      %676 = vmatprep.subr.mxu0 0.0
      %677 = vmatpush1.msra.mxu0 %v174
      %678 = vmatprep.subr.mxu0 0.0
      %679 = vmatpush1.msra.mxu0 %v175
      %680 = vmatprep.subr.mxu0 0.0
      %681 = vmatpush1.msra.mxu0 %v176
      %682 = vmatprep.subr.mxu0 0.0
      %683 = vmatpush1.msra.mxu0 %v177
      %684 = vmatprep.subr.mxu0 0.0
      %685 = vmatpush1.msra.mxu0 0.0
      %686 = vmatprep.subr.mxu0 0.0
      %687 = vmatpush1.msra.mxu0 0.0
      %688 = vmatprep.subr.mxu0 0.0
      %689 = vmatpush1.msra.mxu0 0.0
      %690 = vmatprep.subr.mxu0 0.0
      %691 = vmatpush1.msra.mxu0 0.0
      %692 = vmatprep.subr.mxu0 0.0
      %693 = vmatpush1.msra.mxu0 0.0
      %694 = vmatprep.subr.mxu0 0.0
      %695 = vmatpush1.msra.mxu0 0.0
      %696 = vmatprep.subr.mxu0 0.0
      %697 = vmatpush1.msra.mxu0 0.0
      %698 = vmatprep.subr.mxu0 0.0
      %699 = vmatpush1.msra.mxu0 0.0
      %700 = vmatprep.subr.mxu0 0.0
      %701 = vmatpush1.msra.mxu0 0.0
      %702 = vmatprep.subr.mxu0 0.0
      %703 = vmatpush1.msra.mxu0 0.0
      %704 = vmatprep.subr.mxu0 0.0
      %705 = vmatpush1.msra.mxu0 0.0
      %706 = vmatprep.subr.mxu0 0.0
      %707 = vmatpush1.msra.mxu0 0.0
      %708 = vmatprep.subr.mxu0 0.0
      %709 = vmatpush1.msra.mxu0 0.0
      %710 = vmatprep.subr.mxu0 0.0
      %711 = vmatpush1.msra.mxu0 0.0
      %712 = vmatprep.subr.mxu0 0.0
      %713 = vmatpush1.msra.mxu0 0.0
      %714 = vmatprep.subr.mxu0 0.0
      %715 = vmatpush1.msra.mxu0 0.0
      %716 = vmatprep.mubr.f32.mxu0 0.0
      %v717 = vand.u32 %v145, 4294901760
      %718 = vmatmul.mubr.f32.gmra.mrb[0].mxu0 %v717
      %v719 = vpop.f32.mrb[0].mxu0
      %v720 = vadd.f32 %v649, %v719
      %v721 = vpop.f32.mrb[0].mxu0
      %722 = vdwg.mxu0
      %v723 = vlog2.pop %v720
      %v724 = vmul.f32 %v723, 0.6931472
      %v725 = vsub.f32 %v724, %v143
      %v726 = vsel %vm138, 0.0, %v725
      %727 = vadd.xlane.f32.xlu0 %v726
      %v728 = vpop.xlane.xlu0 %727
      %v729 = vrot.slane %v728, 4
      %v730 = vadd.f32 %v728, %v729
      %v731 = vrot.slane %v730, 2
      %v732 = vadd.f32 %v730, %v731
      %v733 = vrot.slane %v732, 1
      %v734 = vadd.f32 %v732, %v733
      %vm735 = vcmask 0
      %736 = vst.msk [vmem:[%s136] sm:$0x1] %vm735, %v734
      %p737 = scmp.lt.s32.totalorder %s13, 1
      %s738 = scalar_select %p737, %s13, 1
      %s739 = scalar_lea.vmem %s2, %s738
      // Predicated region
      $region29: #{listmle_loss.1} parent=27 // pred_check
        %p740 = pneg %p78
      $region30: #{listmle_loss.1} parent=27 // pred_check_branch
        %742 = sbr.rel (%p740) target = $region32
      $region31: #{listmle_loss.1} parent=27 // pred_region
        _
      $region32: #{listmle_loss.1} parent=27 // pred_fallthru
        _
    $region28: #{listmle_loss.1} parent=5 // pred_fallthru
      _
    %p743 = scmp.le.s32.totalorder 2, %s8
    // Predicated region
    $region33: #{listmle_loss.1} parent=5 // pred_check
      %p744 = pneg %p743
    $region34: #{listmle_loss.1} parent=5 // pred_check_branch
      %746 = sbr.rel (%p744) target = $region36
    $region35: #{listmle_loss.1} parent=5 // pred_region
      %s747 = ssub.s32 %s8, 2
      // Predicated region
      $region37: #{listmle_loss.1} parent=35 // pred_check
        %p748 = pneg %p84
      $region38: #{listmle_loss.1} parent=35 // pred_check_branch
        %750 = sbr.rel (%p748) target = $region40
      $region39: #{listmle_loss.1} parent=35 // pred_region
        %p751 = scmp.lt.s32.totalorder %s14, 1
        %s752 = scalar_select %p751, %s14, 1
        %s753 = scalar_lea.vmem %s2, %s752
      $region40: #{listmle_loss.1} parent=35 // pred_fallthru
        _
    $region36: #{listmle_loss.1} parent=5 // pred_fallthru
      _
  $region6: #{listmle_loss.1} parent=0 // loop_footer
    %s12 = sadd.s32 1, %s8
  $region7: #{listmle_loss.1} parent=0 // loop_footer_branch
    %7 = sbr.rel target = $region3
  $region8: #{listmle_loss.1} parent=0 // loop_exit
    _

</llo_original>
